<compile_context>
chip_gen: v7x
topology: tpu7x:2x2x1
jax: 0.10.0
libtpu: 0.0.40
codegen_flags: <defaults>
</compile_context>

<pallas_src>
import math

import jax
import jax.numpy as jnp
from jax import lax
from jax.experimental import pallas as pl
from jax.experimental.pallas import tpu as pltpu

EPS = 1e-5

_VMEM = pl.BlockSpec(memory_space=pltpu.MemorySpace.VMEM)


# ------------------------------ Pallas kernel ------------------------------- #

def _basic_block_kernel(x_ref, w1_ref, w2_ref, pool_ref,
                        g1_ref, b1_ref, g2_ref, b2_ref,
                        o_ref, lhs_ref):
    """Fused BasicBlock (stride 1): conv1-bn1-relu-conv2-bn2-add-relu.

    x_ref    : (B, H, W*C)     activations, channels innermost on the lane axis
    w*_ref   : (3*W*C, W*C)    stacked block-banded conv slabs (kh-major along K;
                               kw taps + width zero-padding folded in)
    pool_ref : (W*C, W*C)      per-channel averaging matrix, 1/(B*H*W) folded in
    g*/b*_ref: (1, W*C)        BN gamma/beta pre-broadcast to lane layout
    o_ref    : (B, H, W*C)     lane-dense output
    lhs_ref  : (B, H, 3*W*C)   im2row scratch: [row h-1 | row h | row h+1]
    """
    B, H, WC = x_ref.shape
    n = B * H

    def load_lhs(src):
        # im2row: lane segment kh of output row h holds input row h + kh - 1 of
        # the SAME batch image; height-halo rows stay zero (zeroed once below),
        # width zero-padding is baked into the weight slabs.
        lhs_ref[:, :, WC:2 * WC] = src                       # kh = 1 (center)
        lhs_ref[:, 1:H, 0:WC] = src[:, 0:H - 1, :]           # kh = 0 (row above)
        lhs_ref[:, 0:H - 1, 2 * WC:3 * WC] = src[:, 1:H, :]  # kh = 2 (row below)

    def conv3x3(w_ref):
        # One deep-K (K = 3*W*C) MXU matmul per conv.
        return jnp.dot(lhs_ref[...].reshape(n, 3 * WC), w_ref[...],
                       preferred_element_type=jnp.float32)

    def batchnorm(acc, g_ref, b_ref):
        # Training-mode BN (batch statistics, unbiased=False), entirely in lane
        # layout.  Both statistics are pooled across lanes with ONE M=2 matmul;
        # normalize is a single scale/shift FMA with rsqrt on the EUP.
        rsum = jnp.sum(acc, axis=0, keepdims=True)                 # (1, WC)
        rsq = jnp.sum(acc * acc, axis=0, keepdims=True)            # (1, WC)
        pooled = jnp.dot(jnp.concatenate([rsum, rsq], axis=0),
                         pool_ref[...],
                         preferred_element_type=jnp.float32)        # (2, WC)
        mean = pooled[0:1]
        var = pooled[1:2] - mean * mean
        scale = g_ref[...] * lax.rsqrt(var + EPS)
        shift = b_ref[...] - mean * scale
        return acc * scale + shift

    # Zero ONLY the halo lane-rows (2*B rows of W*C lanes), once.  conv2 reuses
    # the same scratch and never touches these positions, so they stay zero.
    lhs_ref[:, 0:1, 0:WC] = jnp.zeros((B, 1, WC), jnp.float32)
    lhs_ref[:, H - 1:H, 2 * WC:3 * WC] = jnp.zeros((B, 1, WC), jnp.float32)

    x = x_ref[...]

    # conv1 -> bn1 -> relu   (intermediate activation never leaves VMEM)
    load_lhs(x)
    y1 = jnp.maximum(batchnorm(conv3x3(w1_ref), g1_ref, b1_ref), 0.0)

    # conv2 -> bn2
    load_lhs(y1.reshape(B, H, WC))
    y2 = batchnorm(conv3x3(w2_ref), g2_ref, b2_ref)

    # identity residual add -> relu, lane-dense store
    o_ref[...] = jnp.maximum(y2.reshape(B, H, WC) + x, 0.0)


# ------------------------------ JAX wrappers -------------------------------- #

def prepare_params(w1_oihw, g1, b1, w2_oihw, g2, b2, input_shape):
    """One-time repack of BasicBlock parameters for the fused kernel.

    Builds, per conv, a single stacked (3*W*C, W*C) block-banded weight slab
    (kh-major along K, kw taps + width zero-padding folded in), the BN
    channel-pooling matrix (mean normalization folded in) and lane-broadcast
    gamma/beta.  Done once, outside the jitted forward.
    """
    B, C, H, W = input_shape
    WC = W * C

    def big_weight(w_oihw):
        w4 = jnp.transpose(w_oihw, (2, 3, 1, 0)).astype(jnp.float32)  # (kh,kw,Ci,Co)
        slabs = []
        for kh in range(3):
            s = jnp.zeros((WC, WC), jnp.float32)
            for kw in range(3):
                # input pixel wi feeds output pixel wo through tap kw when
                # wi == wo + kw - 1 (padding 1); out-of-range taps simply absent.
                shift = jnp.eye(W, k=1 - kw, dtype=jnp.float32)
                s = s + jnp.kron(shift, w4[kh, kw])
            slabs.append(s)
        return jnp.concatenate(slabs, axis=0)                  # (3*WC, WC)

    # pool[wi*C+ci, wo*C+co] = [ci == co] / (B*H*W): per-channel mean, already
    # broadcast back to every lane position of that channel.
    pool = jnp.kron(jnp.ones((W, W), jnp.float32), jnp.eye(C, dtype=jnp.float32))
    pool = pool / float(B * H * W)

    def lane(v):  # (C,) -> (1, W*C), channel pattern repeated along W
        return jnp.tile(v.reshape(1, C).astype(jnp.float32), (1, W))

    return (big_weight(w1_oihw), big_weight(w2_oihw), pool,
            lane(g1), lane(b1), lane(g2), lane(b2))


@jax.jit
def basic_block_forward_lane(x_lane, params):
    """BasicBlock forward on the lane-dense (B, H, W*C) activation layout.

    Chains of BasicBlocks should call this directly and keep activations in
    this layout; the NCHW<->lane transposes are a module-API boundary cost only.
    """
    w1b, w2b, pool, g1l, b1l, g2l, b2l = params
    B, H, WC = x_lane.shape
    n, K = B * H, 3 * WC

    flops = 2 * (2 * n * K * WC) + 2 * (2 * 2 * WC * WC) + 12 * n * WC
    bytes_accessed = 4 * (x_lane.size + w1b.size + w2b.size + pool.size
                          + g1l.size + b1l.size + g2l.size + b2l.size + n * WC)
    footprint = bytes_accessed + 4 * (B * H * K)   # + im2row scratch

    return pl.pallas_call(
        _basic_block_kernel,
        out_shape=jax.ShapeDtypeStruct((B, H, WC), jnp.float32),
        in_specs=[_VMEM] * 8,
        out_specs=_VMEM,
        scratch_shapes=[pltpu.VMEM((B, H, K), jnp.float32)],
        compiler_params=pltpu.CompilerParams(
            vmem_limit_bytes=int(max(8 << 20, 4 * footprint))),
        cost_estimate=pl.CostEstimate(
            flops=flops, transcendentals=2 * WC, bytes_accessed=bytes_accessed),
    )(x_lane, w1b, w2b, pool, g1l, b1l, g2l, b2l)


@jax.jit
def basic_block_forward(x_nchw, params):
    """Module-API (NCHW) wrapper: layout change only at the boundary."""
    B, C, H, W = x_nchw.shape
    x_lane = jnp.transpose(x_nchw, (0, 2, 3, 1)).reshape(B, H, W * C)
    out = basic_block_forward_lane(x_lane, params)
    return jnp.transpose(out.reshape(B, H, W, C), (0, 3, 1, 2))


# ------------------------- pure-JAX reference check ------------------------- #

def _ref_forward(x_nchw, w1_oihw, g1, b1, w2_oihw, g2, b2):
    def conv(x, w):
        return lax.conv_general_dilated(
            x, w, window_strides=(1, 1), padding=((1, 1), (1, 1)),
            dimension_numbers=("NCHW", "OIHW", "NCHW"))

    def bn(x, g, b):
        m = jnp.mean(x, axis=(0, 2, 3), keepdims=True)
        v = jnp.mean((x - m) ** 2, axis=(0, 2, 3), keepdims=True)
        return ((x - m) / jnp.sqrt(v + EPS)) * g.reshape(1, -1, 1, 1) \
            + b.reshape(1, -1, 1, 1)

    left = bn(conv(jnp.maximum(bn(conv(x_nchw, w1_oihw), g1, b1), 0.0),
                   w2_oihw), g2, b2)
    return jnp.maximum(left + x_nchw, 0.0)


# ----------------------------------- main ----------------------------------- #

if __name__ == "__main__":
    # in_feats == out_feats, first_stride == 1; W*C == 128 -> fully lane-dense.
    B, C, H, W = 2, 8, 16, 16
    key = jax.random.PRNGKey(0)
    kx, kw1, kw2, kg1, kb1, kg2, kb2 = jax.random.split(key, 7)

    x = jax.random.normal(kx, (B, C, H, W), dtype=jnp.float32)

    # init_tensor semantics: U(-1/fan, 1/fan), fan = sqrt(Cin * kh * kw).
    fan = math.sqrt(C * 3 * 3)
    w1 = jax.random.uniform(kw1, (C, C, 3, 3), jnp.float32, -1.0 / fan, 1.0 / fan)
    w2 = jax.random.uniform(kw2, (C, C, 3, 3), jnp.float32, -1.0 / fan, 1.0 / fan)
    # BatchNorm2d affine params (init is ones/zeros; use perturbed values so the
    # affine path of the kernel is actually exercised by the check).
    g1 = 1.0 + 0.1 * jax.random.normal(kg1, (C,), jnp.float32)
    b1 = 0.1 * jax.random.normal(kb1, (C,), jnp.float32)
    g2 = 1.0 + 0.1 * jax.random.normal(kg2, (C,), jnp.float32)
    b2 = 0.1 * jax.random.normal(kb2, (C,), jnp.float32)

    params = prepare_params(w1, g1, b1, w2, g2, b2, (B, C, H, W))

    out = basic_block_forward(x, params)
    out = jax.block_until_ready(out)

    ref = _ref_forward(x, w1, g1, b1, w2, g2, b2)
    assert out.shape == (B, C, H, W), out.shape
    assert jnp.allclose(out, ref, atol=1e-4, rtol=1e-4), \
        float(jnp.max(jnp.abs(out - ref)))

    print("KERNEL_OK")
</pallas_src>

<mosaic_0001>
module attributes {stable_mosaic.version = 11 : i64} {
  func.func @_basic_block_kernel(%arg0: memref<2x16x128xf32, #tpu.memory_space<vmem>>, %arg1: memref<384x128xf32, #tpu.memory_space<vmem>>, %arg2: memref<384x128xf32, #tpu.memory_space<vmem>>, %arg3: memref<128x128xf32, #tpu.memory_space<vmem>>, %arg4: memref<1x128xf32, #tpu.memory_space<vmem>>, %arg5: memref<1x128xf32, #tpu.memory_space<vmem>>, %arg6: memref<1x128xf32, #tpu.memory_space<vmem>>, %arg7: memref<1x128xf32, #tpu.memory_space<vmem>>, %arg8: memref<2x16x128xf32, #tpu.memory_space<vmem>>, %arg9: memref<2x16x384xf32, #tpu.memory_space<vmem>>) attributes {dimension_semantics = [], scalar_prefetch = 0 : i64, scratch_operands = 1 : i64, tpu.core_type = #tpu.core_type<tc>} {
    %cst = arith.constant 0.000000e+00 : f32
    %0 = vector.broadcast %cst : f32 to vector<2x1x128xf32>
    %c0 = arith.constant 0 : index
    %c0_0 = arith.constant 0 : index
    %c0_1 = arith.constant 0 : index
    %1 = vector.load %arg9[%c0, %c0_0, %c0_1] : memref<2x16x384xf32, #tpu.memory_space<vmem>>, vector<2x1x128xf32>
    tpu.vector_store %arg9[%c0, %c0_0, %c0_1], %0 {strides = array<i32>} : memref<2x16x384xf32, #tpu.memory_space<vmem>>, vector<2x1x128xf32>,
    %cst_2 = arith.constant 0.000000e+00 : f32
    %2 = vector.broadcast %cst_2 : f32 to vector<2x1x128xf32>
    %c0_3 = arith.constant 0 : index
    %c15 = arith.constant 15 : index
    %c256 = arith.constant 256 : index
    %3 = vector.load %arg9[%c0_3, %c15, %c256] : memref<2x16x384xf32, #tpu.memory_space<vmem>>, vector<2x1x128xf32>
    tpu.vector_store %arg9[%c0_3, %c15, %c256], %2 {strides = array<i32>} : memref<2x16x384xf32, #tpu.memory_space<vmem>>, vector<2x1x128xf32>,
    %c0_4 = arith.constant 0 : index
    %c0_5 = arith.constant 0 : index
    %c0_6 = arith.constant 0 : index
    %4 = vector.load %arg0[%c0_4, %c0_5, %c0_6] : memref<2x16x128xf32, #tpu.memory_space<vmem>>, vector<2x16x128xf32>
    %c0_7 = arith.constant 0 : index
    %c0_8 = arith.constant 0 : index
    %c128 = arith.constant 128 : index
    %5 = vector.load %arg9[%c0_7, %c0_8, %c128] : memref<2x16x384xf32, #tpu.memory_space<vmem>>, vector<2x16x128xf32>
    tpu.vector_store %arg9[%c0_7, %c0_8, %c128], %4 {strides = array<i32>} : memref<2x16x384xf32, #tpu.memory_space<vmem>>, vector<2x16x128xf32>,
    %6 = vector.extract_strided_slice %4 {offsets = [0, 0, 0], sizes = [2, 15, 128], strides = [1, 1, 1]} : vector<2x16x128xf32> to vector<2x15x128xf32>
    %c0_9 = arith.constant 0 : index
    %c1 = arith.constant 1 : index
    %c0_10 = arith.constant 0 : index
    %7 = vector.load %arg9[%c0_9, %c1, %c0_10] : memref<2x16x384xf32, #tpu.memory_space<vmem>>, vector<2x15x128xf32>
    tpu.vector_store %arg9[%c0_9, %c1, %c0_10], %6 {strides = array<i32>} : memref<2x16x384xf32, #tpu.memory_space<vmem>>, vector<2x15x128xf32>,
    %8 = vector.extract_strided_slice %4 {offsets = [0, 1, 0], sizes = [2, 15, 128], strides = [1, 1, 1]} : vector<2x16x128xf32> to vector<2x15x128xf32>
    %c0_11 = arith.constant 0 : index
    %c0_12 = arith.constant 0 : index
    %c256_13 = arith.constant 256 : index
    %9 = vector.load %arg9[%c0_11, %c0_12, %c256_13] : memref<2x16x384xf32, #tpu.memory_space<vmem>>, vector<2x15x128xf32>
    tpu.vector_store %arg9[%c0_11, %c0_12, %c256_13], %8 {strides = array<i32>} : memref<2x16x384xf32, #tpu.memory_space<vmem>>, vector<2x15x128xf32>,
    %c0_14 = arith.constant 0 : index
    %c0_15 = arith.constant 0 : index
    %c0_16 = arith.constant 0 : index
    %10 = vector.load %arg9[%c0_14, %c0_15, %c0_16] : memref<2x16x384xf32, #tpu.memory_space<vmem>>, vector<2x16x384xf32>
    %11 = vector.shape_cast %10 : vector<2x16x384xf32> to vector<32x384xf32>
    %c0_17 = arith.constant 0 : index
    %c0_18 = arith.constant 0 : index
    %12 = vector.load %arg1[%c0_17, %c0_18] : memref<384x128xf32, #tpu.memory_space<vmem>>, vector<384x128xf32>
    %cst_19 = arith.constant dense<0.000000e+00> : vector<32x128xf32>
    %13 = tpu.matmul %11, %12, %cst_19 {dimension_numbers = #tpu.dot_dimension_numbers<[1], [0], [0], [1], [0, 0, 1, 1], [], []>} : vector<32x384xf32>, vector<384x128xf32>, vector<32x128xf32> -> vector<32x128xf32>
    %cst_20 = arith.constant dense<0.000000e+00> : vector<128xf32>
    %14 = vector.multi_reduction <add>, %13, %cst_20 [0] : vector<32x128xf32> to vector<128xf32>
    %15 = vector.shape_cast %14 : vector<128xf32> to vector<1x128xf32>
    %16 = arith.mulf %13, %13 : vector<32x128xf32>
    %cst_21 = arith.constant dense<0.000000e+00> : vector<128xf32>
    %17 = vector.multi_reduction <add>, %16, %cst_21 [0] : vector<32x128xf32> to vector<128xf32>
    %18 = vector.shape_cast %17 : vector<128xf32> to vector<1x128xf32>
    %19 = tpu.concatenate %15, %18 in 0 : vector<1x128xf32>, vector<1x128xf32> -> vector<2x128xf32>
    %c0_22 = arith.constant 0 : index
    %c0_23 = arith.constant 0 : index
    %20 = vector.load %arg3[%c0_22, %c0_23] : memref<128x128xf32, #tpu.memory_space<vmem>>, vector<128x128xf32>
    %cst_24 = arith.constant dense<0.000000e+00> : vector<2x128xf32>
    %21 = tpu.matmul %19, %20, %cst_24 {dimension_numbers = #tpu.dot_dimension_numbers<[1], [0], [0], [1], [0, 0, 1, 1], [], []>} : vector<2x128xf32>, vector<128x128xf32>, vector<2x128xf32> -> vector<2x128xf32>
    %22 = vector.extract_strided_slice %21 {offsets = [0, 0], sizes = [1, 128], strides = [1, 1]} : vector<2x128xf32> to vector<1x128xf32>
    %23 = vector.extract_strided_slice %21 {offsets = [1, 0], sizes = [1, 128], strides = [1, 1]} : vector<2x128xf32> to vector<1x128xf32>
    %24 = arith.mulf %22, %22 : vector<1x128xf32>
    %25 = arith.subf %23, %24 : vector<1x128xf32>
    %c0_25 = arith.constant 0 : index
    %c0_26 = arith.constant 0 : index
    %26 = vector.load %arg4[%c0_25, %c0_26] : memref<1x128xf32, #tpu.memory_space<vmem>>, vector<1x128xf32>
    %cst_27 = arith.constant 9.99999974E-6 : f32
    %27 = vector.broadcast %cst_27 : f32 to vector<1x128xf32>
    %28 = arith.addf %25, %27 : vector<1x128xf32>
    %29 = math.rsqrt %28 : vector<1x128xf32>
    %30 = arith.mulf %26, %29 : vector<1x128xf32>
    %c0_28 = arith.constant 0 : index
    %c0_29 = arith.constant 0 : index
    %31 = vector.load %arg5[%c0_28, %c0_29] : memref<1x128xf32, #tpu.memory_space<vmem>>, vector<1x128xf32>
    %32 = arith.mulf %22, %30 : vector<1x128xf32>
    %33 = arith.subf %31, %32 : vector<1x128xf32>
    %34 = vector.broadcast %30 : vector<1x128xf32> to vector<32x128xf32>
    %35 = arith.mulf %13, %34 : vector<32x128xf32>
    %36 = vector.broadcast %33 : vector<1x128xf32> to vector<32x128xf32>
    %37 = arith.addf %35, %36 : vector<32x128xf32>
    %cst_30 = arith.constant 0.000000e+00 : f32
    %38 = vector.broadcast %cst_30 : f32 to vector<32x128xf32>
    %39 = arith.maximumf %37, %38 : vector<32x128xf32>
    %40 = vector.shape_cast %39 : vector<32x128xf32> to vector<2x16x128xf32>
    %c0_31 = arith.constant 0 : index
    %c0_32 = arith.constant 0 : index
    %c128_33 = arith.constant 128 : index
    %41 = vector.load %arg9[%c0_31, %c0_32, %c128_33] : memref<2x16x384xf32, #tpu.memory_space<vmem>>, vector<2x16x128xf32>
    tpu.vector_store %arg9[%c0_31, %c0_32, %c128_33], %40 {strides = array<i32>} : memref<2x16x384xf32, #tpu.memory_space<vmem>>, vector<2x16x128xf32>,
    %42 = vector.extract_strided_slice %40 {offsets = [0, 0, 0], sizes = [2, 15, 128], strides = [1, 1, 1]} : vector<2x16x128xf32> to vector<2x15x128xf32>
    %c0_34 = arith.constant 0 : index
    %c1_35 = arith.constant 1 : index
    %c0_36 = arith.constant 0 : index
    %43 = vector.load %arg9[%c0_34, %c1_35, %c0_36] : memref<2x16x384xf32, #tpu.memory_space<vmem>>, vector<2x15x128xf32>
    tpu.vector_store %arg9[%c0_34, %c1_35, %c0_36], %42 {strides = array<i32>} : memref<2x16x384xf32, #tpu.memory_space<vmem>>, vector<2x15x128xf32>,
    %44 = vector.extract_strided_slice %40 {offsets = [0, 1, 0], sizes = [2, 15, 128], strides = [1, 1, 1]} : vector<2x16x128xf32> to vector<2x15x128xf32>
    %c0_37 = arith.constant 0 : index
    %c0_38 = arith.constant 0 : index
    %c256_39 = arith.constant 256 : index
    %45 = vector.load %arg9[%c0_37, %c0_38, %c256_39] : memref<2x16x384xf32, #tpu.memory_space<vmem>>, vector<2x15x128xf32>
    tpu.vector_store %arg9[%c0_37, %c0_38, %c256_39], %44 {strides = array<i32>} : memref<2x16x384xf32, #tpu.memory_space<vmem>>, vector<2x15x128xf32>,
    %c0_40 = arith.constant 0 : index
    %c0_41 = arith.constant 0 : index
    %c0_42 = arith.constant 0 : index
    %46 = vector.load %arg9[%c0_40, %c0_41, %c0_42] : memref<2x16x384xf32, #tpu.memory_space<vmem>>, vector<2x16x384xf32>
    %47 = vector.shape_cast %46 : vector<2x16x384xf32> to vector<32x384xf32>
    %c0_43 = arith.constant 0 : index
    %c0_44 = arith.constant 0 : index
    %48 = vector.load %arg2[%c0_43, %c0_44] : memref<384x128xf32, #tpu.memory_space<vmem>>, vector<384x128xf32>
    %cst_45 = arith.constant dense<0.000000e+00> : vector<32x128xf32>
    %49 = tpu.matmul %47, %48, %cst_45 {dimension_numbers = #tpu.dot_dimension_numbers<[1], [0], [0], [1], [0, 0, 1, 1], [], []>} : vector<32x384xf32>, vector<384x128xf32>, vector<32x128xf32> -> vector<32x128xf32>
    %cst_46 = arith.constant dense<0.000000e+00> : vector<128xf32>
    %50 = vector.multi_reduction <add>, %49, %cst_46 [0] : vector<32x128xf32> to vector<128xf32>
    %51 = vector.shape_cast %50 : vector<128xf32> to vector<1x128xf32>
    %52 = arith.mulf %49, %49 : vector<32x128xf32>
    %cst_47 = arith.constant dense<0.000000e+00> : vector<128xf32>
    %53 = vector.multi_reduction <add>, %52, %cst_47 [0] : vector<32x128xf32> to vector<128xf32>
    %54 = vector.shape_cast %53 : vector<128xf32> to vector<1x128xf32>
    %55 = tpu.concatenate %51, %54 in 0 : vector<1x128xf32>, vector<1x128xf32> -> vector<2x128xf32>
    %c0_48 = arith.constant 0 : index
    %c0_49 = arith.constant 0 : index
    %56 = vector.load %arg3[%c0_48, %c0_49] : memref<128x128xf32, #tpu.memory_space<vmem>>, vector<128x128xf32>
    %cst_50 = arith.constant dense<0.000000e+00> : vector<2x128xf32>
    %57 = tpu.matmul %55, %56, %cst_50 {dimension_numbers = #tpu.dot_dimension_numbers<[1], [0], [0], [1], [0, 0, 1, 1], [], []>} : vector<2x128xf32>, vector<128x128xf32>, vector<2x128xf32> -> vector<2x128xf32>
    %58 = vector.extract_strided_slice %57 {offsets = [0, 0], sizes = [1, 128], strides = [1, 1]} : vector<2x128xf32> to vector<1x128xf32>
    %59 = vector.extract_strided_slice %57 {offsets = [1, 0], sizes = [1, 128], strides = [1, 1]} : vector<2x128xf32> to vector<1x128xf32>
    %60 = arith.mulf %58, %58 : vector<1x128xf32>
    %61 = arith.subf %59, %60 : vector<1x128xf32>
    %c0_51 = arith.constant 0 : index
    %c0_52 = arith.constant 0 : index
    %62 = vector.load %arg6[%c0_51, %c0_52] : memref<1x128xf32, #tpu.memory_space<vmem>>, vector<1x128xf32>
    %cst_53 = arith.constant 9.99999974E-6 : f32
    %63 = vector.broadcast %cst_53 : f32 to vector<1x128xf32>
    %64 = arith.addf %61, %63 : vector<1x128xf32>
    %65 = math.rsqrt %64 : vector<1x128xf32>
    %66 = arith.mulf %62, %65 : vector<1x128xf32>
    %c0_54 = arith.constant 0 : index
    %c0_55 = arith.constant 0 : index
    %67 = vector.load %arg7[%c0_54, %c0_55] : memref<1x128xf32, #tpu.memory_space<vmem>>, vector<1x128xf32>
    %68 = arith.mulf %58, %66 : vector<1x128xf32>
    %69 = arith.subf %67, %68 : vector<1x128xf32>
    %70 = vector.broadcast %66 : vector<1x128xf32> to vector<32x128xf32>
    %71 = arith.mulf %49, %70 : vector<32x128xf32>
    %72 = vector.broadcast %69 : vector<1x128xf32> to vector<32x128xf32>
    %73 = arith.addf %71, %72 : vector<32x128xf32>
    %74 = vector.shape_cast %73 : vector<32x128xf32> to vector<2x16x128xf32>
    %75 = arith.addf %74, %4 : vector<2x16x128xf32>
    %cst_56 = arith.constant 0.000000e+00 : f32
    %76 = vector.broadcast %cst_56 : f32 to vector<2x16x128xf32>
    %77 = arith.maximumf %75, %76 : vector<2x16x128xf32>
    %c0_57 = arith.constant 0 : index
    %c0_58 = arith.constant 0 : index
    %c0_59 = arith.constant 0 : index
    %78 = vector.load %arg8[%c0_57, %c0_58, %c0_59] : memref<2x16x128xf32, #tpu.memory_space<vmem>>, vector<2x16x128xf32>
    tpu.vector_store %arg8[%c0_57, %c0_58, %c0_59], %77 {strides = array<i32>} : memref<2x16x128xf32, #tpu.memory_space<vmem>>, vector<2x16x128xf32>,
    return
  }
}

</mosaic_0001>

<llo_original>
// kernel: basic_block_forward_lane.1
$region0: #{basic_block_forward_lane.1}
  #allocation0 [shape = 'u32[]', space=smem, size = 0x4, offset = 0x4, fixed_abs, tag = 'smem constant byte address 0x4 - core index']
  #allocation1 [shape = 'u32[144,128]{1,0:T(1,128)}', space=vmem, size = 0x12000, scoped, tag = 'internal scratch']
  #allocation2 [shape = 'f32[2,16,384]{2,1,0:T(8,128)}', space=vmem, size = 0xc000, scoped, tag = 'scratch operand']
  %s0 = inlined_call_operand.hbm [shape: f32[2,16,128], index: 0, kind: input, shape index: {}]
  %s1 = inlined_call_operand.hbm [shape: f32[384,128], index: 1, kind: input, shape index: {}]
  %s2 = inlined_call_operand.hbm [shape: f32[384,128], index: 2, kind: input, shape index: {}]
  %s3 = inlined_call_operand.hbm [shape: f32[128,128], index: 3, kind: input, shape index: {}]
  %s4 = inlined_call_operand.vmem [shape: f32[1,128], index: 4, kind: input, shape index: {}]
  %s5 = inlined_call_operand.vmem [shape: f32[1,128], index: 5, kind: input, shape index: {}]
  %s6 = inlined_call_operand.vmem [shape: f32[1,128], index: 6, kind: input, shape index: {}]
  %s7 = inlined_call_operand.vmem [shape: f32[1,128], index: 7, kind: input, shape index: {}]
  %s8 = inlined_call_operand.hbm [shape: f32[2,16,128], index: 8, kind: output, shape index: {}]
  %s9 = sld [smem:[#allocation0]]
  $region58: #{basic_block_forward_lane.1} parent=0
    _
  %s11 = ssub.s32 1, %s9
  %s12 = scalar_select 0, %s11, %s9
  $region1: #{basic_block_forward_lane.1} parent=0
    #allocation3 [shape = 'u8[16384]{0}', space=vmem, size = 0x4000, scoped, tag = 'input window, operand 0, single buffered']
    #allocation4 [shape = 's32[1]{0}', space=sflag, size = 0x4, scoped, tag = 'scoped memory for basic_block_forward_lane.1']
    #allocation5 [shape = 's32[1]{0}', space=sflag, size = 0x4, scoped, tag = 'scoped memory for basic_block_forward_lane.1']
    #allocation6 [shape = 'u8[196608]{0}', space=vmem, size = 0x30000, scoped, tag = 'input window, operand 1, single buffered']
    #allocation7 [shape = 's32[1]{0}', space=sflag, size = 0x4, scoped, tag = 'scoped memory for basic_block_forward_lane.1']
    #allocation8 [shape = 'u8[196608]{0}', space=vmem, size = 0x30000, scoped, tag = 'input window, operand 2, single buffered']
    #allocation9 [shape = 'u8[65536]{0}', space=vmem, size = 0x10000, scoped, tag = 'input window, operand 3, single buffered']
    #allocation10 [shape = 's32[1]{0}', space=sflag, size = 0x4, scoped, tag = 'scoped memory for basic_block_forward_lane.1']
    #allocation11 [shape = 'u8[16384]{0}', space=vmem, size = 0x4000, scoped, tag = 'output window, operand 0, single buffered']
    %13 = vsyncpa [#allocation4], 0
    %14 = vsyncpa [#allocation7], 0
    %15 = vsyncpa [#allocation10], 0
    %16 = vsyncpa [#allocation5], 0
    // Predicated region
    $region2: #{basic_block_forward_lane.1} parent=1 // pred_check
      _
    $region3: #{basic_block_forward_lane.1} parent=1 // pred_check_branch
      %18 = sbr.rel (0) target = $region5
    $region4: #{basic_block_forward_lane.1} parent=1 // pred_region
      %s20 = ssub.s32 512, 512
      %21 = vsyncadd [#allocation4], %s20
      %s22 = sshll.u32 [#allocation3], 4
      %s23 = int_to_ptr.vmem [resolvable:$true] %s22
      %28 = dma.hbm_to_vmem [thread:$0]  %s0, 512, %s23, [#allocation4], 128, 128, 8
    $region5: #{basic_block_forward_lane.1} parent=1 // pred_fallthru
      _
    // Predicated region
    $region6: #{basic_block_forward_lane.1} parent=1 // pred_check
      _
    $region7: #{basic_block_forward_lane.1} parent=1 // pred_check_branch
      %30 = sbr.rel (0) target = $region9
    $region8: #{basic_block_forward_lane.1} parent=1 // pred_region
      %s32 = ssub.s32 6144, 6144
      %33 = vsyncadd [#allocation7], %s32
      %s34 = sshll.u32 [#allocation6], 4
      %s35 = int_to_ptr.vmem [resolvable:$true] %s34
      %40 = dma.hbm_to_vmem [thread:$0]  %s1, 6144, %s35, [#allocation7], 128, 128, 8
    $region9: #{basic_block_forward_lane.1} parent=1 // pred_fallthru
      _
    // Predicated region
    $region10: #{basic_block_forward_lane.1} parent=1 // pred_check
      _
    $region11: #{basic_block_forward_lane.1} parent=1 // pred_check_branch
      %42 = sbr.rel (0) target = $region13
    $region12: #{basic_block_forward_lane.1} parent=1 // pred_region
      %s44 = ssub.s32 6144, 6144
      %45 = vsyncadd [#allocation7], %s44
      %s46 = sshll.u32 [#allocation8], 4
      %s47 = int_to_ptr.vmem [resolvable:$true] %s46
      %52 = dma.hbm_to_vmem [thread:$0]  %s2, 6144, %s47, [#allocation7], 128, 128, 8
    $region13: #{basic_block_forward_lane.1} parent=1 // pred_fallthru
      _
    // Predicated region
    $region14: #{basic_block_forward_lane.1} parent=1 // pred_check
      _
    $region15: #{basic_block_forward_lane.1} parent=1 // pred_check_branch
      %54 = sbr.rel (0) target = $region17
    $region16: #{basic_block_forward_lane.1} parent=1 // pred_region
      %s56 = ssub.s32 2048, 2048
      %57 = vsyncadd [#allocation10], %s56
      %s58 = sshll.u32 [#allocation9], 4
      %s59 = int_to_ptr.vmem [resolvable:$true] %s58
      %64 = dma.hbm_to_vmem [thread:$0]  %s3, 2048, %s59, [#allocation10], 128, 128, 8
    $region17: #{basic_block_forward_lane.1} parent=1 // pred_fallthru
      _
    // Predicated region
    $region18: #{basic_block_forward_lane.1} parent=1 // pred_check
      _
    $region19: #{basic_block_forward_lane.1} parent=1 // pred_check_branch
      %66 = sbr.rel (0) target = $region21
    $region20: #{basic_block_forward_lane.1} parent=1 // pred_region
      _
    $region21: #{basic_block_forward_lane.1} parent=1 // pred_fallthru
      _
    // Predicated region
    $region22: #{basic_block_forward_lane.1} parent=1 // pred_check
      _
    $region23: #{basic_block_forward_lane.1} parent=1 // pred_check_branch
      %68 = sbr.rel (0) target = $region25
    $region24: #{basic_block_forward_lane.1} parent=1 // pred_region
      _
    $region25: #{basic_block_forward_lane.1} parent=1 // pred_fallthru
      _
    // Predicated region
    $region26: #{basic_block_forward_lane.1} parent=1 // pred_check
      _
    $region27: #{basic_block_forward_lane.1} parent=1 // pred_check_branch
      %70 = sbr.rel (0) target = $region29
    $region28: #{basic_block_forward_lane.1} parent=1 // pred_region
      _
    $region29: #{basic_block_forward_lane.1} parent=1 // pred_fallthru
      _
    // Predicated region
    $region30: #{basic_block_forward_lane.1} parent=1 // pred_check
      _
    $region31: #{basic_block_forward_lane.1} parent=1 // pred_check_branch
      %72 = sbr.rel (0) target = $region33
    $region32: #{basic_block_forward_lane.1} parent=1 // pred_region
      _
    $region33: #{basic_block_forward_lane.1} parent=1 // pred_fallthru
      _
    // Predicated region
    $region34: #{basic_block_forward_lane.1} parent=1 // pred_check
      _
    $region35: #{basic_block_forward_lane.1} parent=1 // pred_check_branch
      %74 = sbr.rel (0) target = $region37
    $region36: #{basic_block_forward_lane.1} parent=1 // pred_region
      %75 = dma.done [#allocation4], 512
    $region37: #{basic_block_forward_lane.1} parent=1 // pred_fallthru
      _
    // Predicated region
    $region38: #{basic_block_forward_lane.1} parent=1 // pred_check
      _
    $region39: #{basic_block_forward_lane.1} parent=1 // pred_check_branch
      %77 = sbr.rel (0) target = $region41
    $region40: #{basic_block_forward_lane.1} parent=1 // pred_region
      %78 = dma.done [#allocation7], 6144
    $region41: #{basic_block_forward_lane.1} parent=1 // pred_fallthru
      _
    // Predicated region
    $region42: #{basic_block_forward_lane.1} parent=1 // pred_check
      _
    $region43: #{basic_block_forward_lane.1} parent=1 // pred_check_branch
      %80 = sbr.rel (0) target = $region45
    $region44: #{basic_block_forward_lane.1} parent=1 // pred_region
      %81 = dma.done [#allocation7], 6144
    $region45: #{basic_block_forward_lane.1} parent=1 // pred_fallthru
      _
    // Predicated region
    $region46: #{basic_block_forward_lane.1} parent=1 // pred_check
      _
    $region47: #{basic_block_forward_lane.1} parent=1 // pred_check_branch
      %83 = sbr.rel (0) target = $region49
    $region48: #{basic_block_forward_lane.1} parent=1 // pred_region
      %84 = dma.done [#allocation10], 2048
    $region49: #{basic_block_forward_lane.1} parent=1 // pred_fallthru
      _
    %85 = vst [vmem:[#allocation2] sm:$0x1] 0.0
    %86 = vst [vmem:[#allocation2 + $0x30] sm:$0x1] 0.0
    %87 = vst [vmem:[#allocation2 + $0x2f] sm:$0x1] 0.0
    %88 = vst [vmem:[#allocation2 + $0x5f] sm:$0x1] 0.0
    %v89 = vld [vmem:[#allocation3] sm:$0xff]
    %v90 = vld [vmem:[#allocation3 + $0x8] sm:$0xff]
    %v91 = vld [vmem:[#allocation3 + $0x10] sm:$0xff]
    %v92 = vld [vmem:[#allocation3 + $0x18] sm:$0xff]
    %93 = vst [vmem:[#allocation2 + $0x8] sm:$0xff] %v89
    %94 = vst [vmem:[#allocation2 + $0x20] sm:$0xff] %v90
    %95 = vst [vmem:[#allocation2 + $0x38] sm:$0xff] %v91
    %96 = vst [vmem:[#allocation2 + $0x50] sm:$0xff] %v92
    %vm101 = vcmask 1040384
    %v102 = vrot.slane %v89, 7
    %v103 = vrot.slane %v90, 7
    %v104 = vsel %vm101, %v102, %v103
    %v105 = vrot.slane %v91, 7
    %v106 = vrot.slane %v92, 7
    %v107 = vsel %vm101, %v105, %v106
    %112 = vst [vmem:[#allocation2] sm:$0xfe] %v102
    %113 = vst [vmem:[#allocation2 + $0x18] sm:$0xff] %v104
    %114 = vst [vmem:[#allocation2 + $0x30] sm:$0xfe] %v105
    %115 = vst [vmem:[#allocation2 + $0x48] sm:$0xff] %v107
    %vm116 = vcmask 1046528
    %v117 = vrot.slane %v89, 1
    %v118 = vrot.slane %v90, 1
    %v119 = vsel %vm116, %v117, %v118
    %v120 = vrot.slane %v91, 1
    %v121 = vrot.slane %v92, 1
    %v122 = vsel %vm116, %v120, %v121
    %127 = vst [vmem:[#allocation2 + $0x10] sm:$0xff] %v119
    %128 = vst [vmem:[#allocation2 + $0x28] sm:$0x7f] %v118
    %129 = vst [vmem:[#allocation2 + $0x40] sm:$0xff] %v122
    %130 = vst [vmem:[#allocation2 + $0x58] sm:$0x7f] %v121
    %v131 = vld [vmem:[#allocation2] sm:$0xff]
    %v132 = vld [vmem:[#allocation2 + $0x8] sm:$0xff]
    %v133 = vld [vmem:[#allocation2 + $0x10] sm:$0xff]
    %v134 = vld [vmem:[#allocation2 + $0x18] sm:$0xff]
    %v135 = vld [vmem:[#allocation2 + $0x20] sm:$0xff]
    %v136 = vld [vmem:[#allocation2 + $0x28] sm:$0xff]
    %v137 = vld [vmem:[#allocation2 + $0x30] sm:$0xff]
    %v138 = vld [vmem:[#allocation2 + $0x38] sm:$0xff]
    %v139 = vld [vmem:[#allocation2 + $0x40] sm:$0xff]
    %v140 = vld [vmem:[#allocation2 + $0x48] sm:$0xff]
    %v141 = vld [vmem:[#allocation2 + $0x50] sm:$0xff]
    %v142 = vld [vmem:[#allocation2 + $0x58] sm:$0xff]
    %v143 = vld [vmem:[#allocation6] sm:$0xff]
    %v144 = vld [vmem:[#allocation6 + $0x8] sm:$0xff]
    %v145 = vld [vmem:[#allocation6 + $0x10] sm:$0xff]
    %v146 = vld [vmem:[#allocation6 + $0x18] sm:$0xff]
    %v147 = vld [vmem:[#allocation6 + $0x20] sm:$0xff]
    %v148 = vld [vmem:[#allocation6 + $0x28] sm:$0xff]
    %v149 = vld [vmem:[#allocation6 + $0x30] sm:$0xff]
    %v150 = vld [vmem:[#allocation6 + $0x38] sm:$0xff]
    %v151 = vld [vmem:[#allocation6 + $0x40] sm:$0xff]
    %v152 = vld [vmem:[#allocation6 + $0x48] sm:$0xff]
    %v153 = vld [vmem:[#allocation6 + $0x50] sm:$0xff]
    %v154 = vld [vmem:[#allocation6 + $0x58] sm:$0xff]
    %v155 = vld [vmem:[#allocation6 + $0x60] sm:$0xff]
    %v156 = vld [vmem:[#allocation6 + $0x68] sm:$0xff]
    %v157 = vld [vmem:[#allocation6 + $0x70] sm:$0xff]
    %v158 = vld [vmem:[#allocation6 + $0x78] sm:$0xff]
    %v159 = vld [vmem:[#allocation6 + $0x80] sm:$0xff]
    %v160 = vld [vmem:[#allocation6 + $0x88] sm:$0xff]
    %v161 = vld [vmem:[#allocation6 + $0x90] sm:$0xff]
    %v162 = vld [vmem:[#allocation6 + $0x98] sm:$0xff]
    %v163 = vld [vmem:[#allocation6 + $0xa0] sm:$0xff]
    %v164 = vld [vmem:[#allocation6 + $0xa8] sm:$0xff]
    %v165 = vld [vmem:[#allocation6 + $0xb0] sm:$0xff]
    %v166 = vld [vmem:[#allocation6 + $0xb8] sm:$0xff]
    %v167 = vld [vmem:[#allocation6 + $0xc0] sm:$0xff]
    %v168 = vld [vmem:[#allocation6 + $0xc8] sm:$0xff]
    %v169 = vld [vmem:[#allocation6 + $0xd0] sm:$0xff]
    %v170 = vld [vmem:[#allocation6 + $0xd8] sm:$0xff]
    %v171 = vld [vmem:[#allocation6 + $0xe0] sm:$0xff]
    %v172 = vld [vmem:[#allocation6 + $0xe8] sm:$0xff]
    %v173 = vld [vmem:[#allocation6 + $0xf0] sm:$0xff]
    %v174 = vld [vmem:[#allocation6 + $0xf8] sm:$0xff]
    %v175 = vld [vmem:[#allocation6 + $0x100] sm:$0xff]
    %v176 = vld [vmem:[#allocation6 + $0x108] sm:$0xff]
    %v177 = vld [vmem:[#allocation6 + $0x110] sm:$0xff]
    %v178 = vld [vmem:[#allocation6 + $0x118] sm:$0xff]
    %v179 = vld [vmem:[#allocation6 + $0x120] sm:$0xff]
    %v180 = vld [vmem:[#allocation6 + $0x128] sm:$0xff]
    %v181 = vld [vmem:[#allocation6 + $0x130] sm:$0xff]
    %v182 = vld [vmem:[#allocation6 + $0x138] sm:$0xff]
    %v183 = vld [vmem:[#allocation6 + $0x140] sm:$0xff]
    %v184 = vld [vmem:[#allocation6 + $0x148] sm:$0xff]
    %v185 = vld [vmem:[#allocation6 + $0x150] sm:$0xff]
    %v186 = vld [vmem:[#allocation6 + $0x158] sm:$0xff]
    %v187 = vld [vmem:[#allocation6 + $0x160] sm:$0xff]
    %v188 = vld [vmem:[#allocation6 + $0x168] sm:$0xff]
    %v189 = vld [vmem:[#allocation6 + $0x170] sm:$0xff]
    %v190 = vld [vmem:[#allocation6 + $0x178] sm:$0xff]
    %191 = vmatprep.subr.mxu0 0.0
    %192 = vmatpush1.msra.mxu0 %v143
    %193 = vmatprep.subr.mxu0 0.0
    %194 = vmatpush1.msra.mxu0 %v144
    %195 = vmatprep.subr.mxu0 0.0
    %196 = vmatpush1.msra.mxu0 %v145
    %197 = vmatprep.subr.mxu0 0.0
    %198 = vmatpush1.msra.mxu0 %v146
    %199 = vmatprep.subr.mxu0 0.0
    %200 = vmatpush1.msra.mxu0 %v147
    %201 = vmatprep.subr.mxu0 0.0
    %202 = vmatpush1.msra.mxu0 %v148
    %203 = vmatprep.subr.mxu0 0.0
    %204 = vmatpush1.msra.mxu0 %v149
    %205 = vmatprep.subr.mxu0 0.0
    %206 = vmatpush1.msra.mxu0 %v150
    %207 = vmatprep.subr.mxu0 0.0
    %208 = vmatpush1.msra.mxu0 %v151
    %209 = vmatprep.subr.mxu0 0.0
    %210 = vmatpush1.msra.mxu0 %v152
    %211 = vmatprep.subr.mxu0 0.0
    %212 = vmatpush1.msra.mxu0 %v153
    %213 = vmatprep.subr.mxu0 0.0
    %214 = vmatpush1.msra.mxu0 %v154
    %215 = vmatprep.subr.mxu0 0.0
    %216 = vmatpush1.msra.mxu0 %v155
    %217 = vmatprep.subr.mxu0 0.0
    %218 = vmatpush1.msra.mxu0 %v156
    %219 = vmatprep.subr.mxu0 0.0
    %220 = vmatpush1.msra.mxu0 %v157
    %221 = vmatprep.subr.mxu0 0.0
    %222 = vmatpush1.msra.mxu0 %v158
    %223 = vmatprep.subr.mxu0 0.0
    %224 = vmatpush1.msra.mxu0 %v159
    %225 = vmatprep.subr.mxu0 0.0
    %226 = vmatpush1.msra.mxu0 %v160
    %227 = vmatprep.subr.mxu0 0.0
    %228 = vmatpush1.msra.mxu0 %v161
    %229 = vmatprep.subr.mxu0 0.0
    %230 = vmatpush1.msra.mxu0 %v162
    %231 = vmatprep.subr.mxu0 0.0
    %232 = vmatpush1.msra.mxu0 %v163
    %233 = vmatprep.subr.mxu0 0.0
    %234 = vmatpush1.msra.mxu0 %v164
    %235 = vmatprep.subr.mxu0 0.0
    %236 = vmatpush1.msra.mxu0 %v165
    %237 = vmatprep.subr.mxu0 0.0
    %238 = vmatpush1.msra.mxu0 %v166
    %239 = vmatprep.subr.mxu0 0.0
    %240 = vmatpush1.msra.mxu0 %v167
    %241 = vmatprep.subr.mxu0 0.0
    %242 = vmatpush1.msra.mxu0 %v168
    %243 = vmatprep.subr.mxu0 0.0
    %244 = vmatpush1.msra.mxu0 %v169
    %245 = vmatprep.subr.mxu0 0.0
    %246 = vmatpush1.msra.mxu0 %v170
    %247 = vmatprep.subr.mxu0 0.0
    %248 = vmatpush1.msra.mxu0 %v171
    %249 = vmatprep.subr.mxu0 0.0
    %250 = vmatpush1.msra.mxu0 %v172
    %251 = vmatprep.subr.mxu0 0.0
    %252 = vmatpush1.msra.mxu0 %v173
    %253 = vmatprep.subr.mxu0 0.0
    %254 = vmatpush1.msra.mxu0 %v174
    %255 = vmatprep.mubr.f32.mxu0 %v132
    %256 = vmatmul.mubr.f32.gmra.mrb[0].mxu0 %v131
    %v257 = vpop.f32.mrb[0].mxu0
    %v258 = vadd.f32 0.0, %v257
    %v259 = vpop.f32.mrb[0].mxu0
    %260 = vmatprep.mubr.f32.mxu0 %v135
    %261 = vmatmul.mubr.f32.gmra.mrb[0].mxu0 %v134
    %v262 = vpop.f32.mrb[0].mxu0
    %v263 = vadd.f32 0.0, %v262
    %v264 = vpop.f32.mrb[0].mxu0
    %265 = vmatprep.mubr.f32.mxu0 %v138
    %266 = vmatmul.mubr.f32.gmra.mrb[0].mxu0 %v137
    %v267 = vpop.f32.mrb[0].mxu0
    %v268 = vadd.f32 0.0, %v267
    %v269 = vpop.f32.mrb[0].mxu0
    %270 = vmatprep.mubr.f32.mxu0 %v141
    %271 = vmatmul.mubr.f32.gmra.mrb[0].mxu0 %v140
    %v272 = vpop.f32.mrb[0].mxu0
    %v273 = vadd.f32 0.0, %v272
    %v274 = vpop.f32.mrb[0].mxu0
    %275 = vdwg.mxu0
    %276 = vmatprep.subr.mxu0 0.0
    %277 = vmatpush1.msra.mxu0 %v175
    %278 = vmatprep.subr.mxu0 0.0
    %279 = vmatpush1.msra.mxu0 %v176
    %280 = vmatprep.subr.mxu0 0.0
    %281 = vmatpush1.msra.mxu0 %v177
    %282 = vmatprep.subr.mxu0 0.0
    %283 = vmatpush1.msra.mxu0 %v178
    %284 = vmatprep.subr.mxu0 0.0
    %285 = vmatpush1.msra.mxu0 %v179
    %286 = vmatprep.subr.mxu0 0.0
    %287 = vmatpush1.msra.mxu0 %v180
    %288 = vmatprep.subr.mxu0 0.0
    %289 = vmatpush1.msra.mxu0 %v181
    %290 = vmatprep.subr.mxu0 0.0
    %291 = vmatpush1.msra.mxu0 %v182
    %292 = vmatprep.subr.mxu0 0.0
    %293 = vmatpush1.msra.mxu0 %v183
    %294 = vmatprep.subr.mxu0 0.0
    %295 = vmatpush1.msra.mxu0 %v184
    %296 = vmatprep.subr.mxu0 0.0
    %297 = vmatpush1.msra.mxu0 %v185
    %298 = vmatprep.subr.mxu0 0.0
    %299 = vmatpush1.msra.mxu0 %v186
    %300 = vmatprep.subr.mxu0 0.0
    %301 = vmatpush1.msra.mxu0 %v187
    %302 = vmatprep.subr.mxu0 0.0
    %303 = vmatpush1.msra.mxu0 %v188
    %304 = vmatprep.subr.mxu0 0.0
    %305 = vmatpush1.msra.mxu0 %v189
    %306 = vmatprep.subr.mxu0 0.0
    %307 = vmatpush1.msra.mxu0 %v190
    %308 = vmatprep.subr.mxu0 0.0
    %309 = vmatpush1.msra.mxu0 0.0
    %310 = vmatprep.subr.mxu0 0.0
    %311 = vmatpush1.msra.mxu0 0.0
    %312 = vmatprep.subr.mxu0 0.0
    %313 = vmatpush1.msra.mxu0 0.0
    %314 = vmatprep.subr.mxu0 0.0
    %315 = vmatpush1.msra.mxu0 0.0
    %316 = vmatprep.subr.mxu0 0.0
    %317 = vmatpush1.msra.mxu0 0.0
    %318 = vmatprep.subr.mxu0 0.0
    %319 = vmatpush1.msra.mxu0 0.0
    %320 = vmatprep.subr.mxu0 0.0
    %321 = vmatpush1.msra.mxu0 0.0
    %322 = vmatprep.subr.mxu0 0.0
    %323 = vmatpush1.msra.mxu0 0.0
    %324 = vmatprep.subr.mxu0 0.0
    %325 = vmatpush1.msra.mxu0 0.0
    %326 = vmatprep.subr.mxu0 0.0
    %327 = vmatpush1.msra.mxu0 0.0
    %328 = vmatprep.subr.mxu0 0.0
    %329 = vmatpush1.msra.mxu0 0.0
    %330 = vmatprep.subr.mxu0 0.0
    %331 = vmatpush1.msra.mxu0 0.0
    %332 = vmatprep.subr.mxu0 0.0
    %333 = vmatpush1.msra.mxu0 0.0
    %334 = vmatprep.subr.mxu0 0.0
    %335 = vmatpush1.msra.mxu0 0.0
    %336 = vmatprep.subr.mxu0 0.0
    %337 = vmatpush1.msra.mxu0 0.0
    %338 = vmatprep.subr.mxu0 0.0
    %339 = vmatpush1.msra.mxu0 0.0
    %340 = vmatprep.mubr.f32.mxu0 0.0
    %341 = vmatmul.mubr.f32.gmra.mrb[0].mxu0 %v133
    %v342 = vpop.f32.mrb[0].mxu0
    %v343 = vadd.f32 %v258, %v342
    %v344 = vpop.f32.mrb[0].mxu0
    %345 = vmatprep.mubr.f32.mxu0 0.0
    %346 = vmatmul.mubr.f32.gmra.mrb[0].mxu0 %v136
    %v347 = vpop.f32.mrb[0].mxu0
    %v348 = vadd.f32 %v263, %v347
    %v349 = vpop.f32.mrb[0].mxu0
    %350 = vmatprep.mubr.f32.mxu0 0.0
    %351 = vmatmul.mubr.f32.gmra.mrb[0].mxu0 %v139
    %v352 = vpop.f32.mrb[0].mxu0
    %v353 = vadd.f32 %v268, %v352
    %v354 = vpop.f32.mrb[0].mxu0
    %355 = vmatprep.mubr.f32.mxu0 0.0
    %356 = vmatmul.mubr.f32.gmra.mrb[0].mxu0 %v142
    %v357 = vpop.f32.mrb[0].mxu0
    %v358 = vadd.f32 %v273, %v357
    %v359 = vpop.f32.mrb[0].mxu0
    %360 = vdwg.mxu0
    %v361 = vadd.f32 %v343, %v348
    %v362 = vadd.f32 %v361, %v353
    %v363 = vadd.f32 %v362, %v358
    %v364 = vrot.slane %v363, 4
    %v365 = vadd.f32 %v363, %v364
    %v366 = vrot.slane %v365, 2
    %v367 = vadd.f32 %v365, %v366
    %v368 = vrot.slane %v367, 1
    %v369 = vadd.f32 %v367, %v368
    %v370 = vmul.f32 %v343, %v343
    %v371 = vmul.f32 %v348, %v348
    %v372 = vmul.f32 %v353, %v353
    %v373 = vmul.f32 %v358, %v358
    %v374 = vadd.f32 %v370, %v371
    %v375 = vadd.f32 %v374, %v372
    %v376 = vadd.f32 %v375, %v373
    %v377 = vrot.slane %v376, 4
    %v378 = vadd.f32 %v376, %v377
    %v379 = vrot.slane %v378, 2
    %v380 = vadd.f32 %v378, %v379
    %v381 = vrot.slane %v380, 1
    %v382 = vadd.f32 %v380, %v381
    %v383 = vsel %vm101, %v369, %v382
    %v384 = vld [vmem:[#allocation9] sm:$0xff]
    %v385 = vld [vmem:[#allocation9 + $0x8] sm:$0xff]
    %v386 = vld [vmem:[#allocation9 + $0x10] sm:$0xff]
    %v387 = vld [vmem:[#allocation9 + $0x18] sm:$0xff]
    %v388 = vld [vmem:[#allocation9 + $0x20] sm:$0xff]
    %v389 = vld [vmem:[#allocation9 + $0x28] sm:$0xff]
    %v390 = vld [vmem:[#allocation9 + $0x30] sm:$0xff]
    %v391 = vld [vmem:[#allocation9 + $0x38] sm:$0xff]
    %v392 = vld [vmem:[#allocation9 + $0x40] sm:$0xff]
    %v393 = vld [vmem:[#allocation9 + $0x48] sm:$0xff]
    %v394 = vld [vmem:[#allocation9 + $0x50] sm:$0xff]
    %v395 = vld [vmem:[#allocation9 + $0x58] sm:$0xff]
    %v396 = vld [vmem:[#allocation9 + $0x60] sm:$0xff]
    %v397 = vld [vmem:[#allocation9 + $0x68] sm:$0xff]
    %v398 = vld [vmem:[#allocation9 + $0x70] sm:$0xff]
    %v399 = vld [vmem:[#allocation9 + $0x78] sm:$0xff]
    %400 = vmatprep.subr.mxu0 0.0
    %401 = vmatpush1.msra.mxu0 %v384
    %402 = vmatprep.subr.mxu0 0.0
    %403 = vmatpush1.msra.mxu0 %v385
    %404 = vmatprep.subr.mxu0 0.0
    %405 = vmatpush1.msra.mxu0 %v386
    %406 = vmatprep.subr.mxu0 0.0
    %407 = vmatpush1.msra.mxu0 %v387
    %408 = vmatprep.subr.mxu0 0.0
    %409 = vmatpush1.msra.mxu0 %v388
    %410 = vmatprep.subr.mxu0 0.0
    %411 = vmatpush1.msra.mxu0 %v389
    %412 = vmatprep.subr.mxu0 0.0
    %413 = vmatpush1.msra.mxu0 %v390
    %414 = vmatprep.subr.mxu0 0.0
    %415 = vmatpush1.msra.mxu0 %v391
    %416 = vmatprep.subr.mxu0 0.0
    %417 = vmatpush1.msra.mxu0 %v392
    %418 = vmatprep.subr.mxu0 0.0
    %419 = vmatpush1.msra.mxu0 %v393
    %420 = vmatprep.subr.mxu0 0.0
    %421 = vmatpush1.msra.mxu0 %v394
    %422 = vmatprep.subr.mxu0 0.0
    %423 = vmatpush1.msra.mxu0 %v395
    %424 = vmatprep.subr.mxu0 0.0
    %425 = vmatpush1.msra.mxu0 %v396
    %426 = vmatprep.subr.mxu0 0.0
    %427 = vmatpush1.msra.mxu0 %v397
    %428 = vmatprep.subr.mxu0 0.0
    %429 = vmatpush1.msra.mxu0 %v398
    %430 = vmatprep.subr.mxu0 0.0
    %431 = vmatpush1.msra.mxu0 %v399
    %432 = vmatprep.subr.mxu0 0.0
    %433 = vmatpush1.msra.mxu0 0.0
    %434 = vmatprep.subr.mxu0 0.0
    %435 = vmatpush1.msra.mxu0 0.0
    %436 = vmatprep.subr.mxu0 0.0
    %437 = vmatpush1.msra.mxu0 0.0
    %438 = vmatprep.subr.mxu0 0.0
    %439 = vmatpush1.msra.mxu0 0.0
    %440 = vmatprep.subr.mxu0 0.0
    %441 = vmatpush1.msra.mxu0 0.0
    %442 = vmatprep.subr.mxu0 0.0
    %443 = vmatpush1.msra.mxu0 0.0
    %444 = vmatprep.subr.mxu0 0.0
    %445 = vmatpush1.msra.mxu0 0.0
    %446 = vmatprep.subr.mxu0 0.0
    %447 = vmatpush1.msra.mxu0 0.0
    %448 = vmatprep.subr.mxu0 0.0
    %449 = vmatpush1.msra.mxu0 0.0
    %450 = vmatprep.subr.mxu0 0.0
    %451 = vmatpush1.msra.mxu0 0.0
    %452 = vmatprep.subr.mxu0 0.0
    %453 = vmatpush1.msra.mxu0 0.0
    %454 = vmatprep.subr.mxu0 0.0
    %455 = vmatpush1.msra.mxu0 0.0
    %456 = vmatprep.subr.mxu0 0.0
    %457 = vmatpush1.msra.mxu0 0.0
    %458 = vmatprep.subr.mxu0 0.0
    %459 = vmatpush1.msra.mxu0 0.0
    %460 = vmatprep.subr.mxu0 0.0
    %461 = vmatpush1.msra.mxu0 0.0
    %462 = vmatprep.subr.mxu0 0.0
    %463 = vmatpush1.msra.mxu0 0.0
    %464 = vmatprep.mubr.f32.mxu0 0.0
    %465 = vmatmul.mubr.f32.gmra.mrb[0].mxu0 %v383
    %v466 = vpop.f32.mrb[0].mxu0
    %v467 = vadd.f32 0.0, %v466
    %v468 = vpop.f32.mrb[0].mxu0
    %469 = vdwg.mxu0
    %v470 = vmul.f32 %v467, %v467
    %v472 = vrot.slane %v470, 7
    %v474 = vsub.f32 %v467, %v472
    %v475 = vld [vmem:[%s4] sm:$0x1]
    %v476 = vadd.f32 %v474, 1e-05
    %v477 = vrsqrt.pop %v476
    %v480 = vunpack.c.l.s4 1966171168
    %v481 = vunpack.c.0.s8 %v480
    %v482 = vlaneseq
    %v483 = vshrl.u32 %v482, 7
    %v484 = vsub.s32 %v481, %v483
    %v485 = vrot.slane %v477, %v484
    %v486 = vcombine.high %v485, %v485
    %v488 = vunpack.c.l.s4 1966171168
    %v489 = vunpack.c.0.s8 %v488
    %v490 = vlaneseq
    %v491 = vshrl.u32 %v490, 7
    %v492 = vsub.s32 %v489, %v491
    %v493 = vrot.slane %v486, %v492
    %v495 = vmul.f32 %v475, %v493
    %v496 = vld [vmem:[%s5] sm:$0x1]
    %v497 = vmul.f32 %v467, %v495
    %v498 = vsub.f32 %v496, %v497
    %v500 = vlaneseq
    %v501 = vshrl.u32 %v500, 7
    %v502 = vsub.s32 0, %v501
    %v503 = vrot.slane %v495, %v502
    %v505 = vmul.f32 %v343, %v503
    %v506 = vmul.f32 %v348, %v503
    %v507 = vmul.f32 %v353, %v503
    %v508 = vmul.f32 %v358, %v503
    %v510 = vlaneseq
    %v511 = vshrl.u32 %v510, 7
    %v512 = vsub.s32 0, %v511
    %v513 = vrot.slane %v498, %v512
    %v515 = vadd.f32 %v505, %v513
    %v516 = vadd.f32 %v506, %v513
    %v517 = vadd.f32 %v507, %v513
    %v518 = vadd.f32 %v508, %v513
    %v519 = vmax.f32 %v515, 0.0
    %v520 = vmax.f32 %v516, 0.0
    %v521 = vmax.f32 %v517, 0.0
    %v522 = vmax.f32 %v518, 0.0
    %523 = vst [vmem:[#allocation2 + $0x8] sm:$0xff] %v519
    %524 = vst [vmem:[#allocation2 + $0x20] sm:$0xff] %v520
    %525 = vst [vmem:[#allocation2 + $0x38] sm:$0xff] %v521
    %526 = vst [vmem:[#allocation2 + $0x50] sm:$0xff] %v522
    %v531 = vrot.slane %v519, 7
    %v532 = vrot.slane %v520, 7
    %v533 = vsel %vm101, %v531, %v532
    %v534 = vrot.slane %v521, 7
    %v535 = vrot.slane %v522, 7
    %v536 = vsel %vm101, %v534, %v535
    %541 = vst [vmem:[#allocation2] sm:$0xfe] %v531
    %542 = vst [vmem:[#allocation2 + $0x18] sm:$0xff] %v533
    %543 = vst [vmem:[#allocation2 + $0x30] sm:$0xfe] %v534
    %544 = vst [vmem:[#allocation2 + $0x48] sm:$0xff] %v536
    %v545 = vrot.slane %v519, 1
    %v546 = vrot.slane %v520, 1
    %v547 = vsel %vm116, %v545, %v546
    %v548 = vrot.slane %v521, 1
    %v549 = vrot.slane %v522, 1
    %v550 = vsel %vm116, %v548, %v549
    %555 = vst [vmem:[#allocation2 + $0x10] sm:$0xff] %v547
    %556 = vst [vmem:[#allocation2 + $0x28] sm:$0x7f] %v546
    %557 = vst [vmem:[#allocation2 + $0x40] sm:$0xff] %v550
    %558 = vst [vmem:[#allocation2 + $0x58] sm:$0x7f] %v549
    %v559 = vld [vmem:[#allocation2] sm:$0xff]
    %v560 = vld [vmem:[#allocation2 + $0x8] sm:$0xff]
    %v561 = vld [vmem:[#allocation2 + $0x10] sm:$0xff]
    %v562 = vld [vmem:[#allocation2 + $0x18] sm:$0xff]
    %v563 = vld [vmem:[#allocation2 + $0x20] sm:$0xff]
    %v564 = vld [vmem:[#allocation2 + $0x28] sm:$0xff]
    %v565 = vld [vmem:[#allocation2 + $0x30] sm:$0xff]
    %v566 = vld [vmem:[#allocation2 + $0x38] sm:$0xff]
    %v567 = vld [vmem:[#allocation2 + $0x40] sm:$0xff]
    %v568 = vld [vmem:[#allocation2 + $0x48] sm:$0xff]
    %v569 = vld [vmem:[#allocation2 + $0x50] sm:$0xff]
    %v570 = vld [vmem:[#allocation2 + $0x58] sm:$0xff]
    %v571 = vld [vmem:[#allocation8] sm:$0xff]
    %v572 = vld [vmem:[#allocation8 + $0x8] sm:$0xff]
    %v573 = vld [vmem:[#allocation8 + $0x10] sm:$0xff]
    %v574 = vld [vmem:[#allocation8 + $0x18] sm:$0xff]
    %v575 = vld [vmem:[#allocation8 + $0x20] sm:$0xff]
    %v576 = vld [vmem:[#allocation8 + $0x28] sm:$0xff]
    %v577 = vld [vmem:[#allocation8 + $0x30] sm:$0xff]
    %v578 = vld [vmem:[#allocation8 + $0x38] sm:$0xff]
    %v579 = vld [vmem:[#allocation8 + $0x40] sm:$0xff]
    %v580 = vld [vmem:[#allocation8 + $0x48] sm:$0xff]
    %v581 = vld [vmem:[#allocation8 + $0x50] sm:$0xff]
    %v582 = vld [vmem:[#allocation8 + $0x58] sm:$0xff]
    %v583 = vld [vmem:[#allocation8 + $0x60] sm:$0xff]
    %v584 = vld [vmem:[#allocation8 + $0x68] sm:$0xff]
    %v585 = vld [vmem:[#allocation8 + $0x70] sm:$0xff]
    %v586 = vld [vmem:[#allocation8 + $0x78] sm:$0xff]
    %v587 = vld [vmem:[#allocation8 + $0x80] sm:$0xff]
    %v588 = vld [vmem:[#allocation8 + $0x88] sm:$0xff]
    %v589 = vld [vmem:[#allocation8 + $0x90] sm:$0xff]
    %v590 = vld [vmem:[#allocation8 + $0x98] sm:$0xff]
    %v591 = vld [vmem:[#allocation8 + $0xa0] sm:$0xff]
    %v592 = vld [vmem:[#allocation8 + $0xa8] sm:$0xff]
    %v593 = vld [vmem:[#allocation8 + $0xb0] sm:$0xff]
    %v594 = vld [vmem:[#allocation8 + $0xb8] sm:$0xff]
    %v595 = vld [vmem:[#allocation8 + $0xc0] sm:$0xff]
    %v596 = vld [vmem:[#allocation8 + $0xc8] sm:$0xff]
    %v597 = vld [vmem:[#allocation8 + $0xd0] sm:$0xff]
    %v598 = vld [vmem:[#allocation8 + $0xd8] sm:$0xff]
    %v599 = vld [vmem:[#allocation8 + $0xe0] sm:$0xff]
    %v600 = vld [vmem:[#allocation8 + $0xe8] sm:$0xff]
    %v601 = vld [vmem:[#allocation8 + $0xf0] sm:$0xff]
    %v602 = vld [vmem:[#allocation8 + $0xf8] sm:$0xff]
    %v603 = vld [vmem:[#allocation8 + $0x100] sm:$0xff]
    %v604 = vld [vmem:[#allocation8 + $0x108] sm:$0xff]
    %v605 = vld [vmem:[#allocation8 + $0x110] sm:$0xff]
    %v606 = vld [vmem:[#allocation8 + $0x118] sm:$0xff]
    %v607 = vld [vmem:[#allocation8 + $0x120] sm:$0xff]
    %v608 = vld [vmem:[#allocation8 + $0x128] sm:$0xff]
    %v609 = vld [vmem:[#allocation8 + $0x130] sm:$0xff]
    %v610 = vld [vmem:[#allocation8 + $0x138] sm:$0xff]
    %v611 = vld [vmem:[#allocation8 + $0x140] sm:$0xff]
    %v612 = vld [vmem:[#allocation8 + $0x148] sm:$0xff]
    %v613 = vld [vmem:[#allocation8 + $0x150] sm:$0xff]
    %v614 = vld [vmem:[#allocation8 + $0x158] sm:$0xff]
    %v615 = vld [vmem:[#allocation8 + $0x160] sm:$0xff]
    %v616 = vld [vmem:[#allocation8 + $0x168] sm:$0xff]
    %v617 = vld [vmem:[#allocation8 + $0x170] sm:$0xff]
    %v618 = vld [vmem:[#allocation8 + $0x178] sm:$0xff]
    %619 = vmatprep.subr.mxu0 0.0
    %620 = vmatpush1.msra.mxu0 %v571
    %621 = vmatprep.subr.mxu0 0.0
    %622 = vmatpush1.msra.mxu0 %v572
    %623 = vmatprep.subr.mxu0 0.0
    %624 = vmatpush1.msra.mxu0 %v573
    %625 = vmatprep.subr.mxu0 0.0
    %626 = vmatpush1.msra.mxu0 %v574
    %627 = vmatprep.subr.mxu0 0.0
    %628 = vmatpush1.msra.mxu0 %v575
    %629 = vmatprep.subr.mxu0 0.0
    %630 = vmatpush1.msra.mxu0 %v576
    %631 = vmatprep.subr.mxu0 0.0
    %632 = vmatpush1.msra.mxu0 %v577
    %633 = vmatprep.subr.mxu0 0.0
    %634 = vmatpush1.msra.mxu0 %v578
    %635 = vmatprep.subr.mxu0 0.0
    %636 = vmatpush1.msra.mxu0 %v579
    %637 = vmatprep.subr.mxu0 0.0
    %638 = vmatpush1.msra.mxu0 %v580
    %639 = vmatprep.subr.mxu0 0.0
    %640 = vmatpush1.msra.mxu0 %v581
    %641 = vmatprep.subr.mxu0 0.0
    %642 = vmatpush1.msra.mxu0 %v582
    %643 = vmatprep.subr.mxu0 0.0
    %644 = vmatpush1.msra.mxu0 %v583
    %645 = vmatprep.subr.mxu0 0.0
    %646 = vmatpush1.msra.mxu0 %v584
    %647 = vmatprep.subr.mxu0 0.0
    %648 = vmatpush1.msra.mxu0 %v585
    %649 = vmatprep.subr.mxu0 0.0
    %650 = vmatpush1.msra.mxu0 %v586
    %651 = vmatprep.subr.mxu0 0.0
    %652 = vmatpush1.msra.mxu0 %v587
    %653 = vmatprep.subr.mxu0 0.0
    %654 = vmatpush1.msra.mxu0 %v588
    %655 = vmatprep.subr.mxu0 0.0
    %656 = vmatpush1.msra.mxu0 %v589
    %657 = vmatprep.subr.mxu0 0.0
    %658 = vmatpush1.msra.mxu0 %v590
    %659 = vmatprep.subr.mxu0 0.0
    %660 = vmatpush1.msra.mxu0 %v591
    %661 = vmatprep.subr.mxu0 0.0
    %662 = vmatpush1.msra.mxu0 %v592
    %663 = vmatprep.subr.mxu0 0.0
    %664 = vmatpush1.msra.mxu0 %v593
    %665 = vmatprep.subr.mxu0 0.0
    %666 = vmatpush1.msra.mxu0 %v594
    %667 = vmatprep.subr.mxu0 0.0
    %668 = vmatpush1.msra.mxu0 %v595
    %669 = vmatprep.subr.mxu0 0.0
    %670 = vmatpush1.msra.mxu0 %v596
    %671 = vmatprep.subr.mxu0 0.0
    %672 = vmatpush1.msra.mxu0 %v597
    %673 = vmatprep.subr.mxu0 0.0
    %674 = vmatpush1.msra.mxu0 %v598
    %675 = vmatprep.subr.mxu0 0.0
    %676 = vmatpush1.msra.mxu0 %v599
    %677 = vmatprep.subr.mxu0 0.0
    %678 = vmatpush1.msra.mxu0 %v600
    %679 = vmatprep.subr.mxu0 0.0
    %680 = vmatpush1.msra.mxu0 %v601
    %681 = vmatprep.subr.mxu0 0.0
    %682 = vmatpush1.msra.mxu0 %v602
    %683 = vmatprep.mubr.f32.mxu0 %v560
    %684 = vmatmul.mubr.f32.gmra.mrb[0].mxu0 %v559
    %v685 = vpop.f32.mrb[0].mxu0
    %v686 = vadd.f32 0.0, %v685
    %v687 = vpop.f32.mrb[0].mxu0
    %688 = vmatprep.mubr.f32.mxu0 %v563
    %689 = vmatmul.mubr.f32.gmra.mrb[0].mxu0 %v562
    %v690 = vpop.f32.mrb[0].mxu0
    %v691 = vadd.f32 0.0, %v690
    %v692 = vpop.f32.mrb[0].mxu0
    %693 = vmatprep.mubr.f32.mxu0 %v566
    %694 = vmatmul.mubr.f32.gmra.mrb[0].mxu0 %v565
    %v695 = vpop.f32.mrb[0].mxu0
    %v696 = vadd.f32 0.0, %v695
    %v697 = vpop.f32.mrb[0].mxu0
    %698 = vmatprep.mubr.f32.mxu0 %v569
    %699 = vmatmul.mubr.f32.gmra.mrb[0].mxu0 %v568
    %v700 = vpop.f32.mrb[0].mxu0
    %v701 = vadd.f32 0.0, %v700
    %v702 = vpop.f32.mrb[0].mxu0
    %703 = vdwg.mxu0
    %704 = vmatprep.subr.mxu0 0.0
    %705 = vmatpush1.msra.mxu0 %v603
    %706 = vmatprep.subr.mxu0 0.0
    %707 = vmatpush1.msra.mxu0 %v604
    %708 = vmatprep.subr.mxu0 0.0
    %709 = vmatpush1.msra.mxu0 %v605
    %710 = vmatprep.subr.mxu0 0.0
    %711 = vmatpush1.msra.mxu0 %v606
    %712 = vmatprep.subr.mxu0 0.0
    %713 = vmatpush1.msra.mxu0 %v607
    %714 = vmatprep.subr.mxu0 0.0
    %715 = vmatpush1.msra.mxu0 %v608
    %716 = vmatprep.subr.mxu0 0.0
    %717 = vmatpush1.msra.mxu0 %v609
    %718 = vmatprep.subr.mxu0 0.0
    %719 = vmatpush1.msra.mxu0 %v610
    %720 = vmatprep.subr.mxu0 0.0
    %721 = vmatpush1.msra.mxu0 %v611
    %722 = vmatprep.subr.mxu0 0.0
    %723 = vmatpush1.msra.mxu0 %v612
    %724 = vmatprep.subr.mxu0 0.0
    %725 = vmatpush1.msra.mxu0 %v613
    %726 = vmatprep.subr.mxu0 0.0
    %727 = vmatpush1.msra.mxu0 %v614
    %728 = vmatprep.subr.mxu0 0.0
    %729 = vmatpush1.msra.mxu0 %v615
    %730 = vmatprep.subr.mxu0 0.0
    %731 = vmatpush1.msra.mxu0 %v616
    %732 = vmatprep.subr.mxu0 0.0
    %733 = vmatpush1.msra.mxu0 %v617
    %734 = vmatprep.subr.mxu0 0.0
    %735 = vmatpush1.msra.mxu0 %v618
    %736 = vmatprep.subr.mxu0 0.0
    %737 = vmatpush1.msra.mxu0 0.0
    %738 = vmatprep.subr.mxu0 0.0
    %739 = vmatpush1.msra.mxu0 0.0
    %740 = vmatprep.subr.mxu0 0.0
    %741 = vmatpush1.msra.mxu0 0.0
    %742 = vmatprep.subr.mxu0 0.0
    %743 = vmatpush1.msra.mxu0 0.0
    %744 = vmatprep.subr.mxu0 0.0
    %745 = vmatpush1.msra.mxu0 0.0
    %746 = vmatprep.subr.mxu0 0.0
    %747 = vmatpush1.msra.mxu0 0.0
    %748 = vmatprep.subr.mxu0 0.0
    %749 = vmatpush1.msra.mxu0 0.0
    %750 = vmatprep.subr.mxu0 0.0
    %751 = vmatpush1.msra.mxu0 0.0
    %752 = vmatprep.subr.mxu0 0.0
    %753 = vmatpush1.msra.mxu0 0.0
    %754 = vmatprep.subr.mxu0 0.0
    %755 = vmatpush1.msra.mxu0 0.0
    %756 = vmatprep.subr.mxu0 0.0
    %757 = vmatpush1.msra.mxu0 0.0
    %758 = vmatprep.subr.mxu0 0.0
    %759 = vmatpush1.msra.mxu0 0.0
    %760 = vmatprep.subr.mxu0 0.0
    %761 = vmatpush1.msra.mxu0 0.0
    %762 = vmatprep.subr.mxu0 0.0
    %763 = vmatpush1.msra.mxu0 0.0
    %764 = vmatprep.subr.mxu0 0.0
    %765 = vmatpush1.msra.mxu0 0.0
    %766 = vmatprep.subr.mxu0 0.0
    %767 = vmatpush1.msra.mxu0 0.0
    %768 = vmatprep.mubr.f32.mxu0 0.0
    %769 = vmatmul.mubr.f32.gmra.mrb[0].mxu0 %v561
    %v770 = vpop.f32.mrb[0].mxu0
    %v771 = vadd.f32 %v686, %v770
    %v772 = vpop.f32.mrb[0].mxu0
    %773 = vmatprep.mubr.f32.mxu0 0.0
    %774 = vmatmul.mubr.f32.gmra.mrb[0].mxu0 %v564
    %v775 = vpop.f32.mrb[0].mxu0
    %v776 = vadd.f32 %v691, %v775
    %v777 = vpop.f32.mrb[0].mxu0
    %778 = vmatprep.mubr.f32.mxu0 0.0
    %779 = vmatmul.mubr.f32.gmra.mrb[0].mxu0 %v567
    %v780 = vpop.f32.mrb[0].mxu0
    %v781 = vadd.f32 %v696, %v780
    %v782 = vpop.f32.mrb[0].mxu0
    %783 = vmatprep.mubr.f32.mxu0 0.0
    %784 = vmatmul.mubr.f32.gmra.mrb[0].mxu0 %v570
    %v785 = vpop.f32.mrb[0].mxu0
    %v786 = vadd.f32 %v701, %v785
    %v787 = vpop.f32.mrb[0].mxu0
    %788 = vdwg.mxu0
    %v789 = vadd.f32 %v771, %v776
    %v790 = vadd.f32 %v789, %v781
    %v791 = vadd.f32 %v790, %v786
    %v792 = vrot.slane %v791, 4
    %v793 = vadd.f32 %v791, %v792
    %v794 = vrot.slane %v793, 2
    %v795 = vadd.f32 %v793, %v794
    %v796 = vrot.slane %v795, 1
    %v797 = vadd.f32 %v795, %v796
    %v798 = vmul.f32 %v771, %v771
    %v799 = vmul.f32 %v776, %v776
    %v800 = vmul.f32 %v781, %v781
    %v801 = vmul.f32 %v786, %v786
    %v802 = vadd.f32 %v798, %v799
    %v803 = vadd.f32 %v802, %v800
    %v804 = vadd.f32 %v803, %v801
    %v805 = vrot.slane %v804, 4
    %v806 = vadd.f32 %v804, %v805
    %v807 = vrot.slane %v806, 2
    %v808 = vadd.f32 %v806, %v807
    %v809 = vrot.slane %v808, 1
    %v810 = vadd.f32 %v808, %v809
    %v811 = vsel %vm101, %v797, %v810
    %v812 = vld [vmem:[#allocation9] sm:$0xff]
    %v813 = vld [vmem:[#allocation9 + $0x8] sm:$0xff]
    %v814 = vld [vmem:[#allocation9 + $0x10] sm:$0xff]
    %v815 = vld [vmem:[#allocation9 + $0x18] sm:$0xff]
    %v816 = vld [vmem:[#allocation9 + $0x20] sm:$0xff]
    %v817 = vld [vmem:[#allocation9 + $0x28] sm:$0xff]
    %v818 = vld [vmem:[#allocation9 + $0x30] sm:$0xff]
    %v819 = vld [vmem:[#allocation9 + $0x38] sm:$0xff]
    %v820 = vld [vmem:[#allocation9 + $0x40] sm:$0xff]
    %v821 = vld [vmem:[#allocation9 + $0x48] sm:$0xff]
    %v822 = vld [vmem:[#allocation9 + $0x50] sm:$0xff]
    %v823 = vld [vmem:[#allocation9 + $0x58] sm:$0xff]
    %v824 = vld [vmem:[#allocation9 + $0x60] sm:$0xff]
    %v825 = vld [vmem:[#allocation9 + $0x68] sm:$0xff]
    %v826 = vld [vmem:[#allocation9 + $0x70] sm:$0xff]
    %v827 = vld [vmem:[#allocation9 + $0x78] sm:$0xff]
    %828 = vmatprep.subr.mxu0 0.0
    %829 = vmatpush1.msra.mxu0 %v812
    %830 = vmatprep.subr.mxu0 0.0
    %831 = vmatpush1.msra.mxu0 %v813
    %832 = vmatprep.subr.mxu0 0.0
    %833 = vmatpush1.msra.mxu0 %v814
    %834 = vmatprep.subr.mxu0 0.0
    %835 = vmatpush1.msra.mxu0 %v815
    %836 = vmatprep.subr.mxu0 0.0
    %837 = vmatpush1.msra.mxu0 %v816
    %838 = vmatprep.subr.mxu0 0.0
    %839 = vmatpush1.msra.mxu0 %v817
    %840 = vmatprep.subr.mxu0 0.0
    %841 = vmatpush1.msra.mxu0 %v818
    %842 = vmatprep.subr.mxu0 0.0
    %843 = vmatpush1.msra.mxu0 %v819
    %844 = vmatprep.subr.mxu0 0.0
    %845 = vmatpush1.msra.mxu0 %v820
    %846 = vmatprep.subr.mxu0 0.0
    %847 = vmatpush1.msra.mxu0 %v821
    %848 = vmatprep.subr.mxu0 0.0
    %849 = vmatpush1.msra.mxu0 %v822
    %850 = vmatprep.subr.mxu0 0.0
    %851 = vmatpush1.msra.mxu0 %v823
    %852 = vmatprep.subr.mxu0 0.0
    %853 = vmatpush1.msra.mxu0 %v824
    %854 = vmatprep.subr.mxu0 0.0
    %855 = vmatpush1.msra.mxu0 %v825
    %856 = vmatprep.subr.mxu0 0.0
    %857 = vmatpush1.msra.mxu0 %v826
    %858 = vmatprep.subr.mxu0 0.0
    %859 = vmatpush1.msra.mxu0 %v827
    %860 = vmatprep.subr.mxu0 0.0
    %861 = vmatpush1.msra.mxu0 0.0
    %862 = vmatprep.subr.mxu0 0.0
    %863 = vmatpush1.msra.mxu0 0.0
    %864 = vmatprep.subr.mxu0 0.0
    %865 = vmatpush1.msra.mxu0 0.0
    %866 = vmatprep.subr.mxu0 0.0
    %867 = vmatpush1.msra.mxu0 0.0
    %868 = vmatprep.subr.mxu0 0.0
    %869 = vmatpush1.msra.mxu0 0.0
    %870 = vmatprep.subr.mxu0 0.0
    %871 = vmatpush1.msra.mxu0 0.0
    %872 = vmatprep.subr.mxu0 0.0
    %873 = vmatpush1.msra.mxu0 0.0
    %874 = vmatprep.subr.mxu0 0.0
    %875 = vmatpush1.msra.mxu0 0.0
    %876 = vmatprep.subr.mxu0 0.0
    %877 = vmatpush1.msra.mxu0 0.0
    %878 = vmatprep.subr.mxu0 0.0
    %879 = vmatpush1.msra.mxu0 0.0
    %880 = vmatprep.subr.mxu0 0.0
    %881 = vmatpush1.msra.mxu0 0.0
    %882 = vmatprep.subr.mxu0 0.0
    %883 = vmatpush1.msra.mxu0 0.0
    %884 = vmatprep.subr.mxu0 0.0
    %885 = vmatpush1.msra.mxu0 0.0
    %886 = vmatprep.subr.mxu0 0.0
    %887 = vmatpush1.msra.mxu0 0.0
    %888 = vmatprep.subr.mxu0 0.0
    %889 = vmatpush1.msra.mxu0 0.0
    %890 = vmatprep.subr.mxu0 0.0
    %891 = vmatpush1.msra.mxu0 0.0
    %892 = vmatprep.mubr.f32.mxu0 0.0
    %893 = vmatmul.mubr.f32.gmra.mrb[0].mxu0 %v811
    %v894 = vpop.f32.mrb[0].mxu0
    %v895 = vadd.f32 0.0, %v894
    %v896 = vpop.f32.mrb[0].mxu0
    %897 = vdwg.mxu0
    %v898 = vmul.f32 %v895, %v895
    %v900 = vrot.slane %v898, 7
    %v902 = vsub.f32 %v895, %v900
    %v903 = vld [vmem:[%s6] sm:$0x1]
    %v904 = vadd.f32 %v902, 1e-05
    %v905 = vrsqrt.pop %v904
    %v908 = vunpack.c.l.s4 1966171168
    %v909 = vunpack.c.0.s8 %v908
    %v910 = vlaneseq
    %v911 = vshrl.u32 %v910, 7
    %v912 = vsub.s32 %v909, %v911
    %v913 = vrot.slane %v905, %v912
    %v914 = vcombine.high %v913, %v913
    %v916 = vunpack.c.l.s4 1966171168
    %v917 = vunpack.c.0.s8 %v916
    %v918 = vlaneseq
    %v919 = vshrl.u32 %v918, 7
    %v920 = vsub.s32 %v917, %v919
    %v921 = vrot.slane %v914, %v920
    %v923 = vmul.f32 %v903, %v921
    %v924 = vld [vmem:[%s7] sm:$0x1]
    %v925 = vmul.f32 %v895, %v923
    %v926 = vsub.f32 %v924, %v925
    %v928 = vlaneseq
    %v929 = vshrl.u32 %v928, 7
    %v930 = vsub.s32 0, %v929
    %v931 = vrot.slane %v923, %v930
    %v933 = vmul.f32 %v771, %v931
    %v934 = vmul.f32 %v776, %v931
    %v935 = vmul.f32 %v781, %v931
    %v936 = vmul.f32 %v786, %v931
    %v938 = vlaneseq
    %v939 = vshrl.u32 %v938, 7
    %v940 = vsub.s32 0, %v939
    %v941 = vrot.slane %v926, %v940
    %v943 = vadd.f32 %v933, %v941
    %v944 = vadd.f32 %v934, %v941
    %v945 = vadd.f32 %v935, %v941
    %v946 = vadd.f32 %v936, %v941
    %v947 = vadd.f32 %v943, %v89
    %v948 = vadd.f32 %v944, %v90
    %v949 = vadd.f32 %v945, %v91
    %v950 = vadd.f32 %v946, %v92
    %v951 = vmax.f32 %v947, 0.0
    %v952 = vmax.f32 %v948, 0.0
    %v953 = vmax.f32 %v949, 0.0
    %v954 = vmax.f32 %v950, 0.0
    %955 = vst [vmem:[#allocation11] sm:$0xff] %v951
    %956 = vst [vmem:[#allocation11 + $0x8] sm:$0xff] %v952
    %957 = vst [vmem:[#allocation11 + $0x10] sm:$0xff] %v953
    %958 = vst [vmem:[#allocation11 + $0x18] sm:$0xff] %v954
    // Predicated region
    $region50: #{basic_block_forward_lane.1} parent=1 // pred_check
      _
    $region51: #{basic_block_forward_lane.1} parent=1 // pred_check_branch
      %960 = sbr.rel (0) target = $region53
    $region52: #{basic_block_forward_lane.1} parent=1 // pred_region
      %s962 = ssub.s32 512, 512
      %963 = vsyncadd [#allocation5], %s962
      %s964 = sshll.u32 [#allocation11], 4
      %s965 = int_to_ptr.vmem [resolvable:$true] %s964
      %970 = dma.vmem_to_hbm [thread:$0]  %s965, 512, %s8, [#allocation5], 128, 128, 8
    $region53: #{basic_block_forward_lane.1} parent=1 // pred_fallthru
      _
    // Predicated region
    $region54: #{basic_block_forward_lane.1} parent=1 // pred_check
      _
    $region55: #{basic_block_forward_lane.1} parent=1 // pred_check_branch
      %972 = sbr.rel (0) target = $region57
    $region56: #{basic_block_forward_lane.1} parent=1 // pred_region
      %973 = dma.done [#allocation5], 512
    $region57: #{basic_block_forward_lane.1} parent=1 // pred_fallthru
      _
    %974 = vsyncpa [#allocation4], 1
    %975 = vsyncpa [#allocation7], 1
    %976 = vsyncpa [#allocation10], 1
    %977 = vsyncpa [#allocation5], 1

</llo_original>
